<compile_context>
chip_gen: v7x
topology: tpu7x:2x2x1
jax: 0.10.0
libtpu: 0.0.40
codegen_flags: <defaults>
</compile_context>

<pallas_src>
import functools
import math

import jax
import jax.numpy as jnp
from jax.experimental import pallas as pl
from jax.experimental.pallas import tpu as pltpu


def _round_up(x, m):
    return -(-x // m) * m


def _cdiv(a, b):
    return -(-a // b)


# ---------------------------------------------------------------------------
# Kernels
# ---------------------------------------------------------------------------

def _make_stacked_kernel(freq_scale):
    """First Linear as ONE K=2*half matmul (w1 = [w1_cos ; w1_sin] stacked).

    Requires half % 128 == 0 so the in-kernel cos|sin concat is pure vreg
    placement (no XLU relayout).  freq_scale = -log(max_period)/half.
    """

    def kernel(t_ref, w1_ref, b1_ref, w2_ref, b2_ref, out_ref):
        half = w1_ref.shape[0] // 2
        mm = w1_ref.dtype

        # Sinusoidal embedding, generated in-kernel (iota + exp), f32 VPU/EUP.
        t = t_ref[...]                                             # (rows, 1)
        k = jax.lax.broadcasted_iota(jnp.int32, (1, half), 1).astype(jnp.float32)
        args = t * jnp.exp(k * freq_scale)                         # (rows, half)
        emb = jnp.concatenate([jnp.cos(args), jnp.sin(args)], axis=-1)

        # Linear 1 (full-depth K = 2*half contraction) + bias + SiLU.
        h = jnp.dot(emb.astype(mm), w1_ref[...],
                    preferred_element_type=jnp.float32)
        h = h + b1_ref[...]                                        # (rows, Hp) f32
        # sigmoid in the matmul dtype (bf16 EUP on v6e/v7x), multiply in f32.
        h = h * jax.nn.sigmoid(h.astype(mm)).astype(jnp.float32)

        # Linear 2 (lane-dense Hp x Hp).
        out = jnp.dot(h.astype(w2_ref.dtype), w2_ref[...],
                      preferred_element_type=jnp.float32)
        out_ref[...] = out + b2_ref[...]

    return kernel


def _make_split_kernel(freq_scale):
    """Fallback: first Linear split over the cos / sin halves of w1 (two
    K=half matmuls, no lane-axis concat).  Used when half % 128 != 0."""

    def kernel(t_ref, w1c_ref, w1s_ref, b1_ref, w2_ref, b2_ref, out_ref):
        half = w1c_ref.shape[0]
        mm = w1c_ref.dtype

        t = t_ref[...]
        k = jax.lax.broadcasted_iota(jnp.int32, (1, half), 1).astype(jnp.float32)
        args = t * jnp.exp(k * freq_scale)
        cos_e = jnp.cos(args)
        sin_e = jnp.sin(args)

        h = jnp.dot(cos_e.astype(mm), w1c_ref[...],
                    preferred_element_type=jnp.float32)
        h = h + jnp.dot(sin_e.astype(mm), w1s_ref[...],
                        preferred_element_type=jnp.float32)
        h = h + b1_ref[...]
        h = h * jax.nn.sigmoid(h.astype(mm)).astype(jnp.float32)

        out = jnp.dot(h.astype(w2_ref.dtype), w2_ref[...],
                      preferred_element_type=jnp.float32)
        out_ref[...] = out + b2_ref[...]

    return kernel


# ---------------------------------------------------------------------------
# One-time weight preparation (init time, NOT per step)
# ---------------------------------------------------------------------------

def prepare_timestep_embedder_params(w1, b1, w2, b2, *,
                                     frequency_embedding_size=256,
                                     matmul_dtype=jnp.bfloat16):
    """Pad / cast / stack the MLP weights once at model-init time.

    w1 : (frequency_embedding_size, H)  first Linear weight, (in, out) layout
         (transpose of PyTorch nn.Linear's (out, in))
    b1 : (H,)    w2 : (H, H) (in, out)    b2 : (H,)
    Returns a params dict of prepared device arrays for timestep_embedder().
    """
    dim = frequency_embedding_size
    half = dim // 2
    hidden = w2.shape[1]
    assert w1.shape == (dim, hidden), (
        "w1 must be (frequency_embedding_size, hidden) — pass the transpose "
        "of the PyTorch nn.Linear weight")
    assert b1.shape == (hidden,) and w2.shape == (hidden, hidden) \
        and b2.shape == (hidden,), "bad parameter shapes / layout"

    # Lane-dense hidden dim (multiple of 128).  Padded hidden columns stay
    # exactly zero through bias+SiLU, and padded w2 rows/cols are zero, so the
    # (sliced) result is unchanged.
    hp = _round_up(max(hidden, 128), 128)
    ph = hp - hidden

    # cos / sin halves of w1.  For odd `dim` the reference appends a zero
    # embedding column; it multiplies w1's last row, which contributes nothing
    # and is dropped.
    w1c, w1s = w1[:half], w1[half:2 * half]
    b1p = b1.reshape(1, hidden).astype(jnp.float32)
    b2p = b2.reshape(1, hidden).astype(jnp.float32)
    w2p = w2
    if ph:
        w1c = jnp.pad(w1c, ((0, 0), (0, ph)))
        w1s = jnp.pad(w1s, ((0, 0), (0, ph)))
        b1p = jnp.pad(b1p, ((0, 0), (0, ph)))
        b2p = jnp.pad(b2p, ((0, 0), (0, ph)))
        w2p = jnp.pad(w2p, ((0, ph), (0, ph)))
    w1c = w1c.astype(matmul_dtype)
    w1s = w1s.astype(matmul_dtype)
    w2p = w2p.astype(matmul_dtype)

    params = {"b1": b1p, "w2": w2p, "b2": b2p}
    if half > 0 and half % 128 == 0:
        # Lane-aligned halves: stack so the first Linear is one full-depth
        # (K = 2*half) MXU contraction on v6e/v7x's 256-deep MXUs.
        params["w1"] = jnp.concatenate([w1c, w1s], axis=0)     # (2*half, Hp)
    else:
        params["w1c"] = w1c
        params["w1s"] = w1s
    return {k: jax.block_until_ready(v) for k, v in params.items()}


# ---------------------------------------------------------------------------
# Forward
# ---------------------------------------------------------------------------

@functools.partial(
    jax.jit,
    static_argnames=("hidden_dim", "max_period", "row_block",
                     "single_buffer_weights"))
def _timestep_embedder_apply(t, params, *, hidden_dim, max_period=10000,
                             row_block=256, single_buffer_weights=True):
    n = t.shape[0]
    if "w1" in params:                                   # stacked fast path
        w1_args = (params["w1"],)
        half = params["w1"].shape[0] // 2
        kernel = _make_stacked_kernel(-math.log(max_period) / half)
    else:                                                # split fallback path
        w1_args = (params["w1c"], params["w1s"])
        half = params["w1c"].shape[0]
        kernel = _make_split_kernel(-math.log(max_period) / half)
    b1, w2, b2 = params["b1"], params["w2"], params["b2"]
    hp = w2.shape[1]
    mm_bytes = w2.dtype.itemsize

    # Row blocking: blocks divide N with minimal slack; for moderate N force
    # >= 2 grid steps so the "parallel" axis shards across both v7x TCs
    # (harmless ~0.35 us extra grid step on v5e/v6e).
    num_blocks = max(1, _cdiv(n, row_block))
    if num_blocks == 1 and n >= 16:
        num_blocks = 2
    rb = _round_up(_cdiv(n, num_blocks), 8)
    n_pad = num_blocks * rb

    t32 = t.astype(jnp.float32)
    if n_pad != n:
        t32 = jnp.pad(t32, (0, n_pad - n))
    t2d = t32.reshape(n_pad, 1)

    def const_spec(shape):
        # Grid-invariant operand: DMA'd once; single-buffer it to halve its
        # VMEM footprint (most important on v7x's 64 MiB VMEM).
        if single_buffer_weights:
            return pl.BlockSpec(shape, lambda i: (0, 0),
                                pipeline_mode=pl.Buffered(1))
        return pl.BlockSpec(shape, lambda i: (0, 0))

    in_specs = ([pl.BlockSpec((rb, 1), lambda i: (i, 0))]
                + [const_spec(w.shape) for w in w1_args]
                + [const_spec(b1.shape), const_spec(w2.shape),
                   const_spec(b2.shape)])

    # Advisory cost estimate so XLA can schedule neighbouring DiT-block ops
    # around this (tiny) kernel.
    flops = 2 * n_pad * (2 * half * hp + hp * hp)
    transcendentals = n_pad * (2 * half + hp)            # cos + sin + sigmoid
    bytes_accessed = (n_pad * 4 + n_pad * hp * 4 + 2 * hp * 4
                      + (2 * half * hp + hp * hp) * mm_bytes)
    cost = pl.CostEstimate(flops=flops, transcendentals=transcendentals,
                           bytes_accessed=bytes_accessed)

    # Raise the scoped VMEM limit only when the resident buffers need it.
    wbuf = 1 if single_buffer_weights else 2
    weight_vmem = (2 * half * hp + hp * hp) * mm_bytes + 2 * hp * 4
    io_vmem = 2 * (rb * 4 + rb * hp * 4)                 # double-buffered t / out
    vmem_need = wbuf * weight_vmem + io_vmem
    cp_kwargs = dict(dimension_semantics=("parallel",))
    if vmem_need > (12 << 20):
        # TODO(synk): for hidden >~ 2-3k on v7x (64 MiB VMEM) tile the second
        # Linear over w2 column blocks instead of keeping all of w2 resident.
        cp_kwargs["vmem_limit_bytes"] = min(int(vmem_need * 5 // 4) + (2 << 20),
                                            64 << 20)

    out = pl.pallas_call(
        kernel,
        out_shape=jax.ShapeDtypeStruct((n_pad, hp), jnp.float32),
        grid=(num_blocks,),
        in_specs=in_specs,
        out_specs=pl.BlockSpec((rb, hp), lambda i: (i, 0)),
        compiler_params=pltpu.CompilerParams(**cp_kwargs),
        cost_estimate=cost,
    )(t2d, *w1_args, b1, w2, b2)

    # Only slice when padding was actually added (the slice is an extra
    # N x H read + write at the XLA level).
    if n_pad == n and hp == hidden_dim:
        return out
    if hp == hidden_dim:
        return out[:n]
    return out[:n, :hidden_dim]


_SINGLE_BUFFER_WEIGHTS_OK = True


def timestep_embedder(t, params, *, hidden_dim, max_period=10000,
                      row_block=256):
    """TimestepEmbedder forward: t (N,) -> (N, hidden_dim) float32."""
    global _SINGLE_BUFFER_WEIGHTS_OK
    if _SINGLE_BUFFER_WEIGHTS_OK:
        try:
            return _timestep_embedder_apply(
                t, params, hidden_dim=hidden_dim, max_period=max_period,
                row_block=row_block, single_buffer_weights=True)
        except Exception:
            # pl.Buffered(1) rejected by this jax / Mosaic build: fall back to
            # the default double-buffered weight operands (correct either way).
            _SINGLE_BUFFER_WEIGHTS_OK = False
    return _timestep_embedder_apply(
        t, params, hidden_dim=hidden_dim, max_period=max_period,
        row_block=row_block, single_buffer_weights=False)


# ---------------------------------------------------------------------------
# Reference + self-test
# ---------------------------------------------------------------------------

def _reference(t, w1, b1, w2, b2, frequency_embedding_size=256,
               max_period=10000):
    """Plain-JAX transcription of the PyTorch module (f32 everywhere)."""
    dim = frequency_embedding_size
    half = dim // 2
    freqs = jnp.exp(
        -math.log(max_period) * jnp.arange(half, dtype=jnp.float32) / half)
    args = t.astype(jnp.float32)[:, None] * freqs[None]
    emb = jnp.concatenate([jnp.cos(args), jnp.sin(args)], axis=-1)
    if dim % 2:
        emb = jnp.concatenate([emb, jnp.zeros_like(emb[:, :1])], axis=-1)
    h = emb @ w1 + b1
    h = h * jax.nn.sigmoid(h)
    return h @ w2 + b2


if __name__ == "__main__":
    hidden_dim = 32
    freq_size = 256
    batch = 8

    key = jax.random.PRNGKey(0)
    k_t, k_w1, k_b1, k_w2, k_b2 = jax.random.split(key, 5)

    # Deterministic synthetic parameters in (in, out) layout.
    w1 = jax.random.normal(k_w1, (freq_size, hidden_dim), jnp.float32) * 0.02
    b1 = jax.random.normal(k_b1, (hidden_dim,), jnp.float32) * 0.02
    w2 = jax.random.normal(k_w2, (hidden_dim, hidden_dim), jnp.float32) * 0.02
    b2 = jax.random.normal(k_b2, (hidden_dim,), jnp.float32) * 0.02

    # Timesteps: (N,) positive scalars.
    t = jax.random.uniform(k_t, (batch,), jnp.float32, minval=0.0,
                           maxval=1000.0)

    ref = _reference(t, w1, b1, w2, b2, freq_size)

    # One-time weight preparation (init time, not per call).
    params_f32 = prepare_timestep_embedder_params(
        w1, b1, w2, b2, frequency_embedding_size=freq_size,
        matmul_dtype=jnp.float32)
    params_bf16 = prepare_timestep_embedder_params(
        w1, b1, w2, b2, frequency_embedding_size=freq_size,
        matmul_dtype=jnp.bfloat16)

    # Exact-f32 matmul path: tight check against the module-exact reference.
    out_f32 = timestep_embedder(t, params_f32, hidden_dim=hidden_dim)
    out_f32 = jax.block_until_ready(out_f32)
    assert out_f32.shape == (batch, hidden_dim)
    assert jnp.allclose(out_f32, ref, atol=1e-3, rtol=1e-3), \
        "f32 kernel mismatch vs reference"

    # Default bf16-MXU fast path (v6e/v7x; f32 accumulation): loose tolerance.
    out_bf16 = timestep_embedder(t, params_bf16, hidden_dim=hidden_dim)
    out_bf16 = jax.block_until_ready(out_bf16)
    assert out_bf16.shape == (batch, hidden_dim)
    assert jnp.allclose(out_bf16, ref, atol=2e-2, rtol=2e-2), \
        "bf16 kernel mismatch vs reference"

    print("KERNEL_OK")
</pallas_src>

<mosaic_0001>
module attributes {stable_mosaic.version = 11 : i64} {
  func.func @kernel(%arg0: i32, %arg1: memref<8x1xf32, #tpu.memory_space<vmem>>, %arg2: memref<256x128xf32, #tpu.memory_space<vmem>>, %arg3: memref<1x128xf32, #tpu.memory_space<vmem>>, %arg4: memref<128x128xf32, #tpu.memory_space<vmem>>, %arg5: memref<1x128xf32, #tpu.memory_space<vmem>>, %arg6: memref<8x128xf32, #tpu.memory_space<vmem>>) attributes {dimension_semantics = [#tpu.dimension_semantics<parallel>], iteration_bounds = array<i64: 1>, scalar_prefetch = 0 : i64, scratch_operands = 0 : i64, tpu.core_type = #tpu.core_type<tc>, window_params = [{transform_indices = @transform_0, window_bounds = array<i64: 8, 1>}, {pipeline_mode = #tpu.pipeline_mode<synchronous>, transform_indices = @transform_1, window_bounds = array<i64: 256, 128>}, {pipeline_mode = #tpu.pipeline_mode<synchronous>, transform_indices = @transform_2, window_bounds = array<i64: 1, 128>}, {pipeline_mode = #tpu.pipeline_mode<synchronous>, transform_indices = @transform_3, window_bounds = array<i64: 128, 128>}, {pipeline_mode = #tpu.pipeline_mode<synchronous>, transform_indices = @transform_4, window_bounds = array<i64: 1, 128>}, {transform_indices = @transform_5, window_bounds = array<i64: 8, 128>}]} {
    %c0 = arith.constant 0 : index
    %c0_0 = arith.constant 0 : index
    %0 = vector.load %arg1[%c0, %c0_0] : memref<8x1xf32, #tpu.memory_space<vmem>>, vector<8x1xf32>
    %1 = tpu.iota {dimensions = array<i32: 1>} : vector<1x128xi32>
    %2 = arith.sitofp %1 : vector<1x128xi32> to vector<1x128xf32>
    %cst = arith.constant -0.0719557852 : f32
    %3 = vector.broadcast %cst : f32 to vector<1x128xf32>
    %4 = arith.mulf %2, %3 : vector<1x128xf32>
    %5 = math.exp %4 : vector<1x128xf32>
    %6 = vector.broadcast %0 : vector<8x1xf32> to vector<8x128xf32>
    %7 = vector.broadcast %5 : vector<1x128xf32> to vector<8x128xf32>
    %8 = arith.mulf %6, %7 : vector<8x128xf32>
    %9 = math.cos %8 : vector<8x128xf32>
    %10 = math.sin %8 : vector<8x128xf32>
    %11 = tpu.concatenate %9, %10 in 1 : vector<8x128xf32>, vector<8x128xf32> -> vector<8x256xf32>
    %c0_1 = arith.constant 0 : index
    %c0_2 = arith.constant 0 : index
    %12 = vector.load %arg2[%c0_1, %c0_2] : memref<256x128xf32, #tpu.memory_space<vmem>>, vector<256x128xf32>
    %cst_3 = arith.constant dense<0.000000e+00> : vector<8x128xf32>
    %13 = tpu.matmul %11, %12, %cst_3 {dimension_numbers = #tpu.dot_dimension_numbers<[1], [0], [0], [1], [0, 0, 1, 1], [], []>} : vector<8x256xf32>, vector<256x128xf32>, vector<8x128xf32> -> vector<8x128xf32>
    %c0_4 = arith.constant 0 : index
    %c0_5 = arith.constant 0 : index
    %14 = vector.load %arg3[%c0_4, %c0_5] : memref<1x128xf32, #tpu.memory_space<vmem>>, vector<1x128xf32>
    %15 = vector.broadcast %14 : vector<1x128xf32> to vector<8x128xf32>
    %16 = arith.addf %13, %15 : vector<8x128xf32>
    %17 = arith.negf %16 : vector<8x128xf32>
    %18 = math.exp %17 : vector<8x128xf32>
    %cst_6 = arith.constant 1.000000e+00 : f32
    %19 = vector.broadcast %cst_6 : f32 to vector<8x128xf32>
    %20 = arith.addf %19, %18 : vector<8x128xf32>
    %21 = arith.divf %19, %20 : vector<8x128xf32>
    %22 = arith.mulf %16, %21 : vector<8x128xf32>
    %c0_7 = arith.constant 0 : index
    %c0_8 = arith.constant 0 : index
    %23 = vector.load %arg4[%c0_7, %c0_8] : memref<128x128xf32, #tpu.memory_space<vmem>>, vector<128x128xf32>
    %cst_9 = arith.constant dense<0.000000e+00> : vector<8x128xf32>
    %24 = tpu.matmul %22, %23, %cst_9 {dimension_numbers = #tpu.dot_dimension_numbers<[1], [0], [0], [1], [0, 0, 1, 1], [], []>} : vector<8x128xf32>, vector<128x128xf32>, vector<8x128xf32> -> vector<8x128xf32>
    %c0_10 = arith.constant 0 : index
    %c0_11 = arith.constant 0 : index
    %25 = vector.load %arg5[%c0_10, %c0_11] : memref<1x128xf32, #tpu.memory_space<vmem>>, vector<1x128xf32>
    %26 = vector.broadcast %25 : vector<1x128xf32> to vector<8x128xf32>
    %27 = arith.addf %24, %26 : vector<8x128xf32>
    %c0_12 = arith.constant 0 : index
    %c0_13 = arith.constant 0 : index
    %28 = vector.load %arg6[%c0_12, %c0_13] : memref<8x128xf32, #tpu.memory_space<vmem>>, vector<8x128xf32>
    tpu.vector_store %arg6[%c0_12, %c0_13], %27 {strides = array<i32>} : memref<8x128xf32, #tpu.memory_space<vmem>>, vector<8x128xf32>,
    return
  }
  func.func @transform_0(%arg0: i32) -> (i32, i32) {
    %c0_i32 = arith.constant 0 : i32
    %c0_i32_0 = arith.constant 0 : i32
    return %arg0, %c0_i32 : i32, i32
  }
  func.func @transform_1(%arg0: i32) -> (i32, i32) {
    %c0_i32 = arith.constant 0 : i32
    %c0_i32_0 = arith.constant 0 : i32
    %c0_i32_1 = arith.constant 0 : i32
    return %c0_i32, %c0_i32_0 : i32, i32
  }
  func.func @transform_2(%arg0: i32) -> (i32, i32) {
    %c0_i32 = arith.constant 0 : i32
    %c0_i32_0 = arith.constant 0 : i32
    %c0_i32_1 = arith.constant 0 : i32
    return %c0_i32, %c0_i32_0 : i32, i32
  }
  func.func @transform_3(%arg0: i32) -> (i32, i32) {
    %c0_i32 = arith.constant 0 : i32
    %c0_i32_0 = arith.constant 0 : i32
    %c0_i32_1 = arith.constant 0 : i32
    return %c0_i32, %c0_i32_0 : i32, i32
  }
  func.func @transform_4(%arg0: i32) -> (i32, i32) {
    %c0_i32 = arith.constant 0 : i32
    %c0_i32_0 = arith.constant 0 : i32
    %c0_i32_1 = arith.constant 0 : i32
    return %c0_i32, %c0_i32_0 : i32, i32
  }
  func.func @transform_5(%arg0: i32) -> (i32, i32) {
    %c0_i32 = arith.constant 0 : i32
    %c0_i32_0 = arith.constant 0 : i32
    return %arg0, %c0_i32 : i32, i32
  }
}

module attributes {stable_mosaic.version = 11 : i64} {
  func.func @kernel(%arg0: i32, %arg1: memref<8x1xf32, #tpu.memory_space<vmem>>, %arg2: memref<256x128xf32, #tpu.memory_space<vmem>>, %arg3: memref<1x128xf32, #tpu.memory_space<vmem>>, %arg4: memref<128x128xf32, #tpu.memory_space<vmem>>, %arg5: memref<1x128xf32, #tpu.memory_space<vmem>>, %arg6: memref<8x128xf32, #tpu.memory_space<vmem>>) attributes {dimension_semantics = [#tpu.dimension_semantics<parallel>], iteration_bounds = array<i64: 1>, scalar_prefetch = 0 : i64, scratch_operands = 0 : i64, tpu.core_type = #tpu.core_type<tc>, window_params = [{transform_indices = @transform_0, window_bounds = array<i64: 8, 1>}, {pipeline_mode = #tpu.pipeline_mode<synchronous>, transform_indices = @transform_1, window_bounds = array<i64: 256, 128>}, {pipeline_mode = #tpu.pipeline_mode<synchronous>, transform_indices = @transform_2, window_bounds = array<i64: 1, 128>}, {pipeline_mode = #tpu.pipeline_mode<synchronous>, transform_indices = @transform_3, window_bounds = array<i64: 128, 128>}, {pipeline_mode = #tpu.pipeline_mode<synchronous>, transform_indices = @transform_4, window_bounds = array<i64: 1, 128>}, {transform_indices = @transform_5, window_bounds = array<i64: 8, 128>}]} {
    %c0 = arith.constant 0 : index
    %c0_0 = arith.constant 0 : index
    %0 = vector.load %arg1[%c0, %c0_0] : memref<8x1xf32, #tpu.memory_space<vmem>>, vector<8x1xf32>
    %1 = tpu.iota {dimensions = array<i32: 1>} : vector<1x128xi32>
    %2 = arith.sitofp %1 : vector<1x128xi32> to vector<1x128xf32>
    %cst = arith.constant -0.0719557852 : f32
    %3 = vector.broadcast %cst : f32 to vector<1x128xf32>
    %4 = arith.mulf %2, %3 : vector<1x128xf32>
    %5 = math.exp %4 : vector<1x128xf32>
    %6 = vector.broadcast %0 : vector<8x1xf32> to vector<8x128xf32>
    %7 = vector.broadcast %5 : vector<1x128xf32> to vector<8x128xf32>
    %8 = arith.mulf %6, %7 : vector<8x128xf32>
    %9 = math.cos %8 : vector<8x128xf32>
    %10 = math.sin %8 : vector<8x128xf32>
    %11 = tpu.concatenate %9, %10 in 1 : vector<8x128xf32>, vector<8x128xf32> -> vector<8x256xf32>
    %c0_1 = arith.constant 0 : index
    %c0_2 = arith.constant 0 : index
    %12 = vector.load %arg2[%c0_1, %c0_2] : memref<256x128xf32, #tpu.memory_space<vmem>>, vector<256x128xf32>
    %cst_3 = arith.constant dense<0.000000e+00> : vector<8x128xf32>
    %13 = tpu.matmul %11, %12, %cst_3 {dimension_numbers = #tpu.dot_dimension_numbers<[1], [0], [0], [1], [0, 0, 1, 1], [], []>} : vector<8x256xf32>, vector<256x128xf32>, vector<8x128xf32> -> vector<8x128xf32>
    %c0_4 = arith.constant 0 : index
    %c0_5 = arith.constant 0 : index
    %14 = vector.load %arg3[%c0_4, %c0_5] : memref<1x128xf32, #tpu.memory_space<vmem>>, vector<1x128xf32>
    %15 = vector.broadcast %14 : vector<1x128xf32> to vector<8x128xf32>
    %16 = arith.addf %13, %15 : vector<8x128xf32>
    %17 = arith.negf %16 : vector<8x128xf32>
    %18 = math.exp %17 : vector<8x128xf32>
    %cst_6 = arith.constant 1.000000e+00 : f32
    %19 = vector.broadcast %cst_6 : f32 to vector<8x128xf32>
    %20 = arith.addf %19, %18 : vector<8x128xf32>
    %21 = arith.divf %19, %20 : vector<8x128xf32>
    %22 = arith.mulf %16, %21 : vector<8x128xf32>
    %c0_7 = arith.constant 0 : index
    %c0_8 = arith.constant 0 : index
    %23 = vector.load %arg4[%c0_7, %c0_8] : memref<128x128xf32, #tpu.memory_space<vmem>>, vector<128x128xf32>
    %cst_9 = arith.constant dense<0.000000e+00> : vector<8x128xf32>
    %24 = tpu.matmul %22, %23, %cst_9 {dimension_numbers = #tpu.dot_dimension_numbers<[1], [0], [0], [1], [0, 0, 1, 1], [], []>} : vector<8x128xf32>, vector<128x128xf32>, vector<8x128xf32> -> vector<8x128xf32>
    %c0_10 = arith.constant 0 : index
    %c0_11 = arith.constant 0 : index
    %25 = vector.load %arg5[%c0_10, %c0_11] : memref<1x128xf32, #tpu.memory_space<vmem>>, vector<1x128xf32>
    %26 = vector.broadcast %25 : vector<1x128xf32> to vector<8x128xf32>
    %27 = arith.addf %24, %26 : vector<8x128xf32>
    %c0_12 = arith.constant 0 : index
    %c0_13 = arith.constant 0 : index
    %28 = vector.load %arg6[%c0_12, %c0_13] : memref<8x128xf32, #tpu.memory_space<vmem>>, vector<8x128xf32>
    tpu.vector_store %arg6[%c0_12, %c0_13], %27 {strides = array<i32>} : memref<8x128xf32, #tpu.memory_space<vmem>>, vector<8x128xf32>,
    return
  }
  func.func @transform_0(%arg0: i32) -> (i32, i32) {
    %c0_i32 = arith.constant 0 : i32
    %c0_i32_0 = arith.constant 0 : i32
    return %arg0, %c0_i32 : i32, i32
  }
  func.func @transform_1(%arg0: i32) -> (i32, i32) {
    %c0_i32 = arith.constant 0 : i32
    %c0_i32_0 = arith.constant 0 : i32
    %c0_i32_1 = arith.constant 0 : i32
    return %c0_i32, %c0_i32_0 : i32, i32
  }
  func.func @transform_2(%arg0: i32) -> (i32, i32) {
    %c0_i32 = arith.constant 0 : i32
    %c0_i32_0 = arith.constant 0 : i32
    %c0_i32_1 = arith.constant 0 : i32
    return %c0_i32, %c0_i32_0 : i32, i32
  }
  func.func @transform_3(%arg0: i32) -> (i32, i32) {
    %c0_i32 = arith.constant 0 : i32
    %c0_i32_0 = arith.constant 0 : i32
    %c0_i32_1 = arith.constant 0 : i32
    return %c0_i32, %c0_i32_0 : i32, i32
  }
  func.func @transform_4(%arg0: i32) -> (i32, i32) {
    %c0_i32 = arith.constant 0 : i32
    %c0_i32_0 = arith.constant 0 : i32
    %c0_i32_1 = arith.constant 0 : i32
    return %c0_i32, %c0_i32_0 : i32, i32
  }
  func.func @transform_5(%arg0: i32) -> (i32, i32) {
    %c0_i32 = arith.constant 0 : i32
    %c0_i32_0 = arith.constant 0 : i32
    return %arg0, %c0_i32 : i32, i32
  }
}

</mosaic_0001>

<llo_original>
// kernel: _timestep_embedder_apply.1
$region0: #{_timestep_embedder_apply.1}
  #allocation0 [shape = 'u32[]', space=smem, size = 0x4, offset = 0x4, fixed_abs, tag = 'smem constant byte address 0x4 - core index']
  #allocation1 [shape = 'u32[144,128]{1,0:T(1,128)}', space=vmem, size = 0x12000, scoped, tag = 'internal scratch']
  %s0 = inlined_call_operand.vmem [shape: f32[8,1], index: 0, kind: input, shape index: {}]
  %s1 = inlined_call_operand.hbm [shape: f32[256,128], index: 1, kind: input, shape index: {}]
  %s2 = inlined_call_operand.vmem [shape: f32[1,128], index: 2, kind: input, shape index: {}]
  %s3 = inlined_call_operand.hbm [shape: f32[128,128], index: 3, kind: input, shape index: {}]
  %s4 = inlined_call_operand.vmem [shape: f32[1,128], index: 4, kind: input, shape index: {}]
  %s5 = inlined_call_operand.hbm [shape: f32[8,128], index: 5, kind: output, shape index: {}]
  %s6 = sld [smem:[#allocation0]]
  $region38: #{_timestep_embedder_apply.1} parent=0
    _
  %s8 = ssub.s32 1, %s6
  %s9 = scalar_select 0, %s8, %s6
  $region1: #{_timestep_embedder_apply.1} parent=0
    #allocation2 [shape = 'u8[131072]{0}', space=vmem, size = 0x20000, scoped, tag = 'input window, operand 1, single buffered']
    #allocation3 [shape = 's32[1]{0}', space=sflag, size = 0x4, scoped, tag = 'scoped memory for _timestep_embedder_apply.1']
    #allocation4 [shape = 's32[1]{0}', space=sflag, size = 0x4, scoped, tag = 'scoped memory for _timestep_embedder_apply.1']
    #allocation5 [shape = 'u8[65536]{0}', space=vmem, size = 0x10000, scoped, tag = 'input window, operand 3, single buffered']
    #allocation6 [shape = 's32[1]{0}', space=sflag, size = 0x4, scoped, tag = 'scoped memory for _timestep_embedder_apply.1']
    #allocation7 [shape = 'u8[4096]{0}', space=vmem, size = 0x1000, scoped, tag = 'output window, operand 0, single buffered']
    %10 = vsyncpa [#allocation3], 0
    %11 = vsyncpa [#allocation6], 0
    %12 = vsyncpa [#allocation4], 0
    // Predicated region
    $region2: #{_timestep_embedder_apply.1} parent=1 // pred_check
      _
    $region3: #{_timestep_embedder_apply.1} parent=1 // pred_check_branch
      %14 = sbr.rel (0) target = $region5
    $region4: #{_timestep_embedder_apply.1} parent=1 // pred_region
      _
    $region5: #{_timestep_embedder_apply.1} parent=1 // pred_fallthru
      _
    // Predicated region
    $region6: #{_timestep_embedder_apply.1} parent=1 // pred_check
      _
    $region7: #{_timestep_embedder_apply.1} parent=1 // pred_check_branch
      %16 = sbr.rel (0) target = $region9
    $region8: #{_timestep_embedder_apply.1} parent=1 // pred_region
      %s18 = ssub.s32 4096, 4096
      %19 = vsyncadd [#allocation3], %s18
      %s20 = sshll.u32 [#allocation2], 4
      %s21 = int_to_ptr.vmem [resolvable:$true] %s20
      %26 = dma.hbm_to_vmem [thread:$0]  %s1, 4096, %s21, [#allocation3], 128, 128, 8
    $region9: #{_timestep_embedder_apply.1} parent=1 // pred_fallthru
      _
    // Predicated region
    $region10: #{_timestep_embedder_apply.1} parent=1 // pred_check
      _
    $region11: #{_timestep_embedder_apply.1} parent=1 // pred_check_branch
      %28 = sbr.rel (0) target = $region13
    $region12: #{_timestep_embedder_apply.1} parent=1 // pred_region
      _
    $region13: #{_timestep_embedder_apply.1} parent=1 // pred_fallthru
      _
    // Predicated region
    $region14: #{_timestep_embedder_apply.1} parent=1 // pred_check
      _
    $region15: #{_timestep_embedder_apply.1} parent=1 // pred_check_branch
      %30 = sbr.rel (0) target = $region17
    $region16: #{_timestep_embedder_apply.1} parent=1 // pred_region
      %s32 = ssub.s32 2048, 2048
      %33 = vsyncadd [#allocation6], %s32
      %s34 = sshll.u32 [#allocation5], 4
      %s35 = int_to_ptr.vmem [resolvable:$true] %s34
      %40 = dma.hbm_to_vmem [thread:$0]  %s3, 2048, %s35, [#allocation6], 128, 128, 8
    $region17: #{_timestep_embedder_apply.1} parent=1 // pred_fallthru
      _
    // Predicated region
    $region18: #{_timestep_embedder_apply.1} parent=1 // pred_check
      _
    $region19: #{_timestep_embedder_apply.1} parent=1 // pred_check_branch
      %42 = sbr.rel (0) target = $region21
    $region20: #{_timestep_embedder_apply.1} parent=1 // pred_region
      _
    $region21: #{_timestep_embedder_apply.1} parent=1 // pred_fallthru
      _
    // Predicated region
    $region22: #{_timestep_embedder_apply.1} parent=1 // pred_check
      _
    $region23: #{_timestep_embedder_apply.1} parent=1 // pred_check_branch
      %44 = sbr.rel (0) target = $region25
    $region24: #{_timestep_embedder_apply.1} parent=1 // pred_region
      %45 = dma.done [#allocation3], 4096
    $region25: #{_timestep_embedder_apply.1} parent=1 // pred_fallthru
      _
    // Predicated region
    $region26: #{_timestep_embedder_apply.1} parent=1 // pred_check
      _
    $region27: #{_timestep_embedder_apply.1} parent=1 // pred_check_branch
      %47 = sbr.rel (0) target = $region29
    $region28: #{_timestep_embedder_apply.1} parent=1 // pred_region
      %48 = dma.done [#allocation6], 2048
    $region29: #{_timestep_embedder_apply.1} parent=1 // pred_fallthru
      _
    %v49 = vld [vmem:[%s0] sm:$0xff]
    %v50 = vlaneseq
    %v51 = vand.u32 %v50, 127
    %v52 = vcvt.s32.f32 %v51
    %v53 = vmul.f32 %v52, -0.071955785
    %v54 = vmul.f32 %v53, 1.442695
    %v55 = vpow.pop %v54
    %57 = vset.pattern.permute.xlu0 0
    %58 = vperm.xlu0 %57, %v49
    %v59 = vpop.permute.xlu0 %58
    %v61 = vmul.f32 %v59, %v55
    %v62 = vand.u32 2147483647, %v61
    %vm63 = vcmp.le.f32.partialorder %v62, 0.7853982
    %vm64 = vcmp.lt.s32.totalorder %v61, 0
    %v65 = vand.u32 %v61, 2139095040
    %v66 = vshrl.u32 %v65, 23
    %v67 = vsub.s32 %v66, 127
    %v68 = vand.u32 2147483647, %v61
    %v69 = vand.u32 %v68, 8388607
    %v70 = vor.u32 %v69, 8388608
    %v71 = vsub.s32 0, %v70
    %v72 = vadd.s32 %v67, 1
    %vm73 = vcmp.gt.s32.totalorder %v72, 0
    %v74 = vsel %vm73, %v72, 0
    %v75 = vshrl.u32 %v74, 5
    %v76 = vand.u32 %v74, 31
    %v77 = vsub.s32 32, %v76
    %v78 = vshrl.u32 683565275, %v77
    %v79 = vshll.u32 683565275, %v76
    %v80 = vshrl.u32 2475754826, %v77
    %v81 = vor.u32 %v79, %v80
    %v82 = vshll.u32 2475754826, %v76
    %v83 = vshrl.u32 2131351028, %v77
    %v84 = vor.u32 %v82, %v83
    %v85 = vshll.u32 2131351028, %v76
    %v86 = vshrl.u32 2102212464, %v77
    %v87 = vor.u32 %v85, %v86
    %v88 = vshll.u32 2102212464, %v76
    %v89 = vshrl.u32 920167782, %v77
    %v90 = vor.u32 %v88, %v89
    %v91 = vshll.u32 920167782, %v76
    %v92 = vshrl.u32 1326507024, %v77
    %v93 = vor.u32 %v91, %v92
    %vm94 = vcmp.lt.s32.totalorder %v75, 1
    %vm95 = vcmp.lt.s32.totalorder %v75, 2
    %vm96 = vcmp.lt.s32.totalorder %v75, 3
    %vm97 = vcmp.lt.s32.totalorder %v75, 4
    %v98 = vsel %vm94, %v78, %v81
    %v99 = vsel %vm97, %v87, 2102212464
    %v100 = vsel %vm96, %v84, %v99
    %v101 = vsel %vm95, %v98, %v100
    %v102 = vsel %vm94, %v81, %v84
    %v103 = vsel %vm97, %v90, 920167782
    %v104 = vsel %vm96, %v87, %v103
    %v105 = vsel %vm95, %v102, %v104
    %v106 = vsel %vm94, %v84, %v87
    %v107 = vsel %vm97, %v93, 1326507024
    %v108 = vsel %vm96, %v90, %v107
    %v109 = vsel %vm95, %v106, %v108
    %v110 = vshll.u32 %v70, 8
    %v111 = vmul.u32.u64.compose %v110, %v109
    %v112 = vextract.low.u32 %v111
    %v113 = vextract.high.u32 %v111
    %v114 = vmul.u32.u64.compose %v110, %v105
    %v115 = vextract.low.u32 %v114
    %v116 = vextract.high.u32 %v114
    %v117 = vmul.u32 %v110, %v101
    %v118 = vadd.s32 %v113, %v115
    %vm119 = vc.u32 %v113, %v115
    %v120 = vadd.s32 %v116, 1
    %v121 = vsel %vm119, %v120, %v116
    %v122 = vadd.s32 %v117, %v121
    %v123 = vadd.s32 %v122, 536870912
    %v124 = vshrl.u32 %v123, 30
    %v125 = vshll.u32 %v124, 30
    %v126 = vsub.s32 %v122, %v125
    %vm127 = vcmp.lt.s32.totalorder %v126, 0
    %v128 = vsub.s32 0, %v126
    %v129 = vsel %vm127, %v128, %v126
    %v130 = vclz %v129
    %v131 = vsub.s32 %v130, 2
    %vm132 = vcmp.gt.s32.totalorder 0, %v131
    %v133 = vsel %vm132, 0, %v131
    %v134 = vsub.s32 32, %v133
    %v135 = vshll.u32 %v126, %v133
    %v136 = vshrl.u32 %v118, %v134
    %v137 = vor.u32 %v135, %v136
    %v138 = vsub.s32 4294967266, %v133
    %v139 = vadd.s32 %v138, 127
    %v140 = vshll.u32 %v139, 23
    %v141 = vor.u32 4788187, %v140
    %v142 = vand.u32 2147483647, %v141
    %v144 = vcvt.s32.f32 %v137
    %v145 = vmul.f32 %v144, %v142
    %v146 = vxor.u32 %v145, 2147483648
    %v147 = vsel %vm64, %v146, %v145
    %v148 = vsub.s32 4, %v124
    %v149 = vsel %vm64, %v148, %v124
    %v150 = vsel %vm63, %v61, %v147
    %v151 = vsel %vm63, 0, %v149
    %v152 = vcosq.f32.pop %v150
    %v153 = vsinq.f32.pop %v150
    %vm154 = vweird.f32 %v61
    %v155 = vand.u32 %v151, 3
    %vm156 = vcmp.lt.s32.totalorder %v155, 2
    %vm157 = vcmp.eq.s32.totalorder %v155, 0
    %v158 = vxor.u32 %v153, 2147483648
    %v159 = vsel %vm157, %v152, %v158
    %vm160 = vcmp.eq.s32.totalorder %v155, 2
    %v161 = vxor.u32 %v152, 2147483648
    %v162 = vsel %vm160, %v161, %v153
    %v163 = vsel %vm156, %v159, %v162
    %v164 = vsel %vm154, nan, %v163
    %v165 = vand.u32 2147483647, %v61
    %vm166 = vcmp.le.f32.partialorder %v165, 0.7853982
    %vm167 = vcmp.lt.s32.totalorder %v61, 0
    %v168 = vand.u32 %v61, 2139095040
    %v169 = vshrl.u32 %v168, 23
    %v170 = vsub.s32 %v169, 127
    %v171 = vand.u32 2147483647, %v61
    %v172 = vand.u32 %v171, 8388607
    %v173 = vor.u32 %v172, 8388608
    %v174 = vsub.s32 0, %v173
    %v175 = vadd.s32 %v170, 1
    %vm176 = vcmp.gt.s32.totalorder %v175, 0
    %v177 = vsel %vm176, %v175, 0
    %v178 = vshrl.u32 %v177, 5
    %v179 = vand.u32 %v177, 31
    %v180 = vsub.s32 32, %v179
    %v181 = vshrl.u32 683565275, %v180
    %v182 = vshll.u32 683565275, %v179
    %v183 = vshrl.u32 2475754826, %v180
    %v184 = vor.u32 %v182, %v183
    %v185 = vshll.u32 2475754826, %v179
    %v186 = vshrl.u32 2131351028, %v180
    %v187 = vor.u32 %v185, %v186
    %v188 = vshll.u32 2131351028, %v179
    %v189 = vshrl.u32 2102212464, %v180
    %v190 = vor.u32 %v188, %v189
    %v191 = vshll.u32 2102212464, %v179
    %v192 = vshrl.u32 920167782, %v180
    %v193 = vor.u32 %v191, %v192
    %v194 = vshll.u32 920167782, %v179
    %v195 = vshrl.u32 1326507024, %v180
    %v196 = vor.u32 %v194, %v195
    %vm197 = vcmp.lt.s32.totalorder %v178, 1
    %vm198 = vcmp.lt.s32.totalorder %v178, 2
    %vm199 = vcmp.lt.s32.totalorder %v178, 3
    %vm200 = vcmp.lt.s32.totalorder %v178, 4
    %v201 = vsel %vm197, %v181, %v184
    %v202 = vsel %vm200, %v190, 2102212464
    %v203 = vsel %vm199, %v187, %v202
    %v204 = vsel %vm198, %v201, %v203
    %v205 = vsel %vm197, %v184, %v187
    %v206 = vsel %vm200, %v193, 920167782
    %v207 = vsel %vm199, %v190, %v206
    %v208 = vsel %vm198, %v205, %v207
    %v209 = vsel %vm197, %v187, %v190
    %v210 = vsel %vm200, %v196, 1326507024
    %v211 = vsel %vm199, %v193, %v210
    %v212 = vsel %vm198, %v209, %v211
    %v213 = vshll.u32 %v173, 8
    %v214 = vmul.u32.u64.compose %v213, %v212
    %v215 = vextract.low.u32 %v214
    %v216 = vextract.high.u32 %v214
    %v217 = vmul.u32.u64.compose %v213, %v208
    %v218 = vextract.low.u32 %v217
    %v219 = vextract.high.u32 %v217
    %v220 = vmul.u32 %v213, %v204
    %v221 = vadd.s32 %v216, %v218
    %vm222 = vc.u32 %v216, %v218
    %v223 = vadd.s32 %v219, 1
    %v224 = vsel %vm222, %v223, %v219
    %v225 = vadd.s32 %v220, %v224
    %v226 = vadd.s32 %v225, 536870912
    %v227 = vshrl.u32 %v226, 30
    %v228 = vshll.u32 %v227, 30
    %v229 = vsub.s32 %v225, %v228
    %vm230 = vcmp.lt.s32.totalorder %v229, 0
    %v231 = vsub.s32 0, %v229
    %v232 = vsel %vm230, %v231, %v229
    %v233 = vclz %v232
    %v234 = vsub.s32 %v233, 2
    %vm235 = vcmp.gt.s32.totalorder 0, %v234
    %v236 = vsel %vm235, 0, %v234
    %v237 = vsub.s32 32, %v236
    %v238 = vshll.u32 %v229, %v236
    %v239 = vshrl.u32 %v221, %v237
    %v240 = vor.u32 %v238, %v239
    %v241 = vsub.s32 4294967266, %v236
    %v242 = vadd.s32 %v241, 127
    %v243 = vshll.u32 %v242, 23
    %v244 = vor.u32 4788187, %v243
    %v245 = vand.u32 2147483647, %v244
    %v247 = vcvt.s32.f32 %v240
    %v248 = vmul.f32 %v247, %v245
    %v249 = vxor.u32 %v248, 2147483648
    %v250 = vsel %vm167, %v249, %v248
    %v251 = vsub.s32 4, %v227
    %v252 = vsel %vm167, %v251, %v227
    %v253 = vsel %vm166, %v61, %v250
    %v254 = vsel %vm166, 0, %v252
    %v255 = vcosq.f32.pop %v253
    %v256 = vsinq.f32.pop %v253
    %vm257 = vweird.f32 %v61
    %v258 = vadd.s32 %v254, 3
    %v259 = vand.u32 %v258, 3
    %vm260 = vcmp.lt.s32.totalorder %v259, 2
    %vm261 = vcmp.eq.s32.totalorder %v259, 0
    %v262 = vxor.u32 %v256, 2147483648
    %v263 = vsel %vm261, %v255, %v262
    %vm264 = vcmp.eq.s32.totalorder %v259, 2
    %v265 = vxor.u32 %v255, 2147483648
    %v266 = vsel %vm264, %v265, %v256
    %v267 = vsel %vm260, %v263, %v266
    %v268 = vsel %vm257, nan, %v267
    %v269 = vld [vmem:[#allocation2] sm:$0xff]
    %v270 = vld [vmem:[#allocation2 + $0x8] sm:$0xff]
    %v271 = vld [vmem:[#allocation2 + $0x10] sm:$0xff]
    %v272 = vld [vmem:[#allocation2 + $0x18] sm:$0xff]
    %v273 = vld [vmem:[#allocation2 + $0x20] sm:$0xff]
    %v274 = vld [vmem:[#allocation2 + $0x28] sm:$0xff]
    %v275 = vld [vmem:[#allocation2 + $0x30] sm:$0xff]
    %v276 = vld [vmem:[#allocation2 + $0x38] sm:$0xff]
    %v277 = vld [vmem:[#allocation2 + $0x40] sm:$0xff]
    %v278 = vld [vmem:[#allocation2 + $0x48] sm:$0xff]
    %v279 = vld [vmem:[#allocation2 + $0x50] sm:$0xff]
    %v280 = vld [vmem:[#allocation2 + $0x58] sm:$0xff]
    %v281 = vld [vmem:[#allocation2 + $0x60] sm:$0xff]
    %v282 = vld [vmem:[#allocation2 + $0x68] sm:$0xff]
    %v283 = vld [vmem:[#allocation2 + $0x70] sm:$0xff]
    %v284 = vld [vmem:[#allocation2 + $0x78] sm:$0xff]
    %v285 = vld [vmem:[#allocation2 + $0x80] sm:$0xff]
    %v286 = vld [vmem:[#allocation2 + $0x88] sm:$0xff]
    %v287 = vld [vmem:[#allocation2 + $0x90] sm:$0xff]
    %v288 = vld [vmem:[#allocation2 + $0x98] sm:$0xff]
    %v289 = vld [vmem:[#allocation2 + $0xa0] sm:$0xff]
    %v290 = vld [vmem:[#allocation2 + $0xa8] sm:$0xff]
    %v291 = vld [vmem:[#allocation2 + $0xb0] sm:$0xff]
    %v292 = vld [vmem:[#allocation2 + $0xb8] sm:$0xff]
    %v293 = vld [vmem:[#allocation2 + $0xc0] sm:$0xff]
    %v294 = vld [vmem:[#allocation2 + $0xc8] sm:$0xff]
    %v295 = vld [vmem:[#allocation2 + $0xd0] sm:$0xff]
    %v296 = vld [vmem:[#allocation2 + $0xd8] sm:$0xff]
    %v297 = vld [vmem:[#allocation2 + $0xe0] sm:$0xff]
    %v298 = vld [vmem:[#allocation2 + $0xe8] sm:$0xff]
    %v299 = vld [vmem:[#allocation2 + $0xf0] sm:$0xff]
    %v300 = vld [vmem:[#allocation2 + $0xf8] sm:$0xff]
    %v301 = vld [vmem:[%s2] sm:$0x1]
    %v303 = vlaneseq
    %v304 = vshrl.u32 %v303, 7
    %v305 = vsub.s32 0, %v304
    %v306 = vrot.slane %v301, %v305
    %308 = vmatprep.subr.mxu0 0.0
    %309 = vmatpush1.msra.mxu0 %v269
    %310 = vmatprep.subr.mxu0 0.0
    %311 = vmatpush1.msra.mxu0 %v270
    %312 = vmatprep.subr.mxu0 0.0
    %313 = vmatpush1.msra.mxu0 %v271
    %314 = vmatprep.subr.mxu0 0.0
    %315 = vmatpush1.msra.mxu0 %v272
    %316 = vmatprep.subr.mxu0 0.0
    %317 = vmatpush1.msra.mxu0 %v273
    %318 = vmatprep.subr.mxu0 0.0
    %319 = vmatpush1.msra.mxu0 %v274
    %320 = vmatprep.subr.mxu0 0.0
    %321 = vmatpush1.msra.mxu0 %v275
    %322 = vmatprep.subr.mxu0 0.0
    %323 = vmatpush1.msra.mxu0 %v276
    %324 = vmatprep.subr.mxu0 0.0
    %325 = vmatpush1.msra.mxu0 %v277
    %326 = vmatprep.subr.mxu0 0.0
    %327 = vmatpush1.msra.mxu0 %v278
    %328 = vmatprep.subr.mxu0 0.0
    %329 = vmatpush1.msra.mxu0 %v279
    %330 = vmatprep.subr.mxu0 0.0
    %331 = vmatpush1.msra.mxu0 %v280
    %332 = vmatprep.subr.mxu0 0.0
    %333 = vmatpush1.msra.mxu0 %v281
    %334 = vmatprep.subr.mxu0 0.0
    %335 = vmatpush1.msra.mxu0 %v282
    %336 = vmatprep.subr.mxu0 0.0
    %337 = vmatpush1.msra.mxu0 %v283
    %338 = vmatprep.subr.mxu0 0.0
    %339 = vmatpush1.msra.mxu0 %v284
    %340 = vmatprep.subr.mxu0 0.0
    %341 = vmatpush1.msra.mxu0 %v285
    %342 = vmatprep.subr.mxu0 0.0
    %343 = vmatpush1.msra.mxu0 %v286
    %344 = vmatprep.subr.mxu0 0.0
    %345 = vmatpush1.msra.mxu0 %v287
    %346 = vmatprep.subr.mxu0 0.0
    %347 = vmatpush1.msra.mxu0 %v288
    %348 = vmatprep.subr.mxu0 0.0
    %349 = vmatpush1.msra.mxu0 %v289
    %350 = vmatprep.subr.mxu0 0.0
    %351 = vmatpush1.msra.mxu0 %v290
    %352 = vmatprep.subr.mxu0 0.0
    %353 = vmatpush1.msra.mxu0 %v291
    %354 = vmatprep.subr.mxu0 0.0
    %355 = vmatpush1.msra.mxu0 %v292
    %356 = vmatprep.subr.mxu0 0.0
    %357 = vmatpush1.msra.mxu0 %v293
    %358 = vmatprep.subr.mxu0 0.0
    %359 = vmatpush1.msra.mxu0 %v294
    %360 = vmatprep.subr.mxu0 0.0
    %361 = vmatpush1.msra.mxu0 %v295
    %362 = vmatprep.subr.mxu0 0.0
    %363 = vmatpush1.msra.mxu0 %v296
    %364 = vmatprep.subr.mxu0 0.0
    %365 = vmatpush1.msra.mxu0 %v297
    %366 = vmatprep.subr.mxu0 0.0
    %367 = vmatpush1.msra.mxu0 %v298
    %368 = vmatprep.subr.mxu0 0.0
    %369 = vmatpush1.msra.mxu0 %v299
    %370 = vmatprep.subr.mxu0 0.0
    %371 = vmatpush1.msra.mxu0 %v300
    %372 = vmatprep.mubr.f32.mxu0 %v268
    %373 = vmatmul.mubr.f32.gmra.mrb[0].mxu0 %v164
    %v374 = vpop.f32.mrb[0].mxu0
    %v375 = vadd.f32 %v306, %v374
    %v376 = vpop.f32.mrb[0].mxu0
    %377 = vdwg.mxu0
    %v378 = vxor.u32 %v375, 2147483648
    %v379 = vmul.f32 %v378, 1.442695
    %v380 = vpow.pop %v379
    %v381 = vadd.f32 %v380, 1.0
    %v382 = vrcp.pop %v381
    %v383 = vmul.f32 1.0, %v382
    %v384 = vmul.f32 %v375, %v383
    %v385 = vld [vmem:[#allocation5] sm:$0xff]
    %v386 = vld [vmem:[#allocation5 + $0x8] sm:$0xff]
    %v387 = vld [vmem:[#allocation5 + $0x10] sm:$0xff]
    %v388 = vld [vmem:[#allocation5 + $0x18] sm:$0xff]
    %v389 = vld [vmem:[#allocation5 + $0x20] sm:$0xff]
    %v390 = vld [vmem:[#allocation5 + $0x28] sm:$0xff]
    %v391 = vld [vmem:[#allocation5 + $0x30] sm:$0xff]
    %v392 = vld [vmem:[#allocation5 + $0x38] sm:$0xff]
    %v393 = vld [vmem:[#allocation5 + $0x40] sm:$0xff]
    %v394 = vld [vmem:[#allocation5 + $0x48] sm:$0xff]
    %v395 = vld [vmem:[#allocation5 + $0x50] sm:$0xff]
    %v396 = vld [vmem:[#allocation5 + $0x58] sm:$0xff]
    %v397 = vld [vmem:[#allocation5 + $0x60] sm:$0xff]
    %v398 = vld [vmem:[#allocation5 + $0x68] sm:$0xff]
    %v399 = vld [vmem:[#allocation5 + $0x70] sm:$0xff]
    %v400 = vld [vmem:[#allocation5 + $0x78] sm:$0xff]
    %v401 = vld [vmem:[%s4] sm:$0x1]
    %v403 = vlaneseq
    %v404 = vshrl.u32 %v403, 7
    %v405 = vsub.s32 0, %v404
    %v406 = vrot.slane %v401, %v405
    %408 = vmatprep.subr.mxu0 0.0
    %409 = vmatpush1.msra.mxu0 %v385
    %410 = vmatprep.subr.mxu0 0.0
    %411 = vmatpush1.msra.mxu0 %v386
    %412 = vmatprep.subr.mxu0 0.0
    %413 = vmatpush1.msra.mxu0 %v387
    %414 = vmatprep.subr.mxu0 0.0
    %415 = vmatpush1.msra.mxu0 %v388
    %416 = vmatprep.subr.mxu0 0.0
    %417 = vmatpush1.msra.mxu0 %v389
    %418 = vmatprep.subr.mxu0 0.0
    %419 = vmatpush1.msra.mxu0 %v390
    %420 = vmatprep.subr.mxu0 0.0
    %421 = vmatpush1.msra.mxu0 %v391
    %422 = vmatprep.subr.mxu0 0.0
    %423 = vmatpush1.msra.mxu0 %v392
    %424 = vmatprep.subr.mxu0 0.0
    %425 = vmatpush1.msra.mxu0 %v393
    %426 = vmatprep.subr.mxu0 0.0
    %427 = vmatpush1.msra.mxu0 %v394
    %428 = vmatprep.subr.mxu0 0.0
    %429 = vmatpush1.msra.mxu0 %v395
    %430 = vmatprep.subr.mxu0 0.0
    %431 = vmatpush1.msra.mxu0 %v396
    %432 = vmatprep.subr.mxu0 0.0
    %433 = vmatpush1.msra.mxu0 %v397
    %434 = vmatprep.subr.mxu0 0.0
    %435 = vmatpush1.msra.mxu0 %v398
    %436 = vmatprep.subr.mxu0 0.0
    %437 = vmatpush1.msra.mxu0 %v399
    %438 = vmatprep.subr.mxu0 0.0
    %439 = vmatpush1.msra.mxu0 %v400
    %440 = vmatprep.subr.mxu0 0.0
    %441 = vmatpush1.msra.mxu0 0.0
    %442 = vmatprep.subr.mxu0 0.0
    %443 = vmatpush1.msra.mxu0 0.0
    %444 = vmatprep.subr.mxu0 0.0
    %445 = vmatpush1.msra.mxu0 0.0
    %446 = vmatprep.subr.mxu0 0.0
    %447 = vmatpush1.msra.mxu0 0.0
    %448 = vmatprep.subr.mxu0 0.0
    %449 = vmatpush1.msra.mxu0 0.0
    %450 = vmatprep.subr.mxu0 0.0
    %451 = vmatpush1.msra.mxu0 0.0
    %452 = vmatprep.subr.mxu0 0.0
    %453 = vmatpush1.msra.mxu0 0.0
    %454 = vmatprep.subr.mxu0 0.0
    %455 = vmatpush1.msra.mxu0 0.0
    %456 = vmatprep.subr.mxu0 0.0
    %457 = vmatpush1.msra.mxu0 0.0
    %458 = vmatprep.subr.mxu0 0.0
    %459 = vmatpush1.msra.mxu0 0.0
    %460 = vmatprep.subr.mxu0 0.0
    %461 = vmatpush1.msra.mxu0 0.0
    %462 = vmatprep.subr.mxu0 0.0
    %463 = vmatpush1.msra.mxu0 0.0
    %464 = vmatprep.subr.mxu0 0.0
    %465 = vmatpush1.msra.mxu0 0.0
    %466 = vmatprep.subr.mxu0 0.0
    %467 = vmatpush1.msra.mxu0 0.0
    %468 = vmatprep.subr.mxu0 0.0
    %469 = vmatpush1.msra.mxu0 0.0
    %470 = vmatprep.subr.mxu0 0.0
    %471 = vmatpush1.msra.mxu0 0.0
    %472 = vmatprep.mubr.f32.mxu0 0.0
    %473 = vmatmul.mubr.f32.gmra.mrb[0].mxu0 %v384
    %v474 = vpop.f32.mrb[0].mxu0
    %v475 = vadd.f32 %v406, %v474
    %v476 = vpop.f32.mrb[0].mxu0
    %477 = vdwg.mxu0
    %478 = vst [vmem:[#allocation7] sm:$0xff] %v475
    // Predicated region
    $region30: #{_timestep_embedder_apply.1} parent=1 // pred_check
      _
    $region31: #{_timestep_embedder_apply.1} parent=1 // pred_check_branch
      %480 = sbr.rel (0) target = $region33
    $region32: #{_timestep_embedder_apply.1} parent=1 // pred_region
      %s482 = ssub.s32 128, 128
      %483 = vsyncadd [#allocation4], %s482
      %s485 = sshll.u32 [#allocation7], 4
      %s486 = int_to_ptr.vmem [resolvable:$true] %s485
      %488 = dma.vmem_to_hbm [thread:$0]  %s486, 128, %s5, [#allocation4]
    $region33: #{_timestep_embedder_apply.1} parent=1 // pred_fallthru
      _
    // Predicated region
    $region34: #{_timestep_embedder_apply.1} parent=1 // pred_check
      _
    $region35: #{_timestep_embedder_apply.1} parent=1 // pred_check_branch
      %490 = sbr.rel (0) target = $region37
    $region36: #{_timestep_embedder_apply.1} parent=1 // pred_region
      %491 = dma.done [#allocation4], 128
    $region37: #{_timestep_embedder_apply.1} parent=1 // pred_fallthru
      _
    %492 = vsyncpa [#allocation3], 1
    %493 = vsyncpa [#allocation6], 1
    %494 = vsyncpa [#allocation4], 1

// kernel: _timestep_embedder_apply.1
$region0: #{_timestep_embedder_apply.1}
  #allocation0 [shape = 'u32[]', space=smem, size = 0x4, offset = 0x4, fixed_abs, tag = 'smem constant byte address 0x4 - core index']
  #allocation1 [shape = 'u32[144,128]{1,0:T(1,128)}', space=vmem, size = 0x12000, scoped, tag = 'internal scratch']
  %s0 = inlined_call_operand.vmem [shape: f32[8,1], index: 0, kind: input, shape index: {}]
  %s1 = inlined_call_operand.hbm [shape: f32[256,128], index: 1, kind: input, shape index: {}]
  %s2 = inlined_call_operand.vmem [shape: f32[1,128], index: 2, kind: input, shape index: {}]
  %s3 = inlined_call_operand.hbm [shape: f32[128,128], index: 3, kind: input, shape index: {}]
  %s4 = inlined_call_operand.vmem [shape: f32[1,128], index: 4, kind: input, shape index: {}]
  %s5 = inlined_call_operand.hbm [shape: f32[8,128], index: 5, kind: output, shape index: {}]
  %s6 = sld [smem:[#allocation0]]
  $region38: #{_timestep_embedder_apply.1} parent=0
    _
  %s8 = ssub.s32 1, %s6
  %s9 = scalar_select 0, %s8, %s6
  $region1: #{_timestep_embedder_apply.1} parent=0
    #allocation2 [shape = 'u8[131072]{0}', space=vmem, size = 0x20000, scoped, tag = 'input window, operand 1, single buffered']
    #allocation3 [shape = 's32[1]{0}', space=sflag, size = 0x4, scoped, tag = 'scoped memory for _timestep_embedder_apply.1']
    #allocation4 [shape = 's32[1]{0}', space=sflag, size = 0x4, scoped, tag = 'scoped memory for _timestep_embedder_apply.1']
    #allocation5 [shape = 'u8[65536]{0}', space=vmem, size = 0x10000, scoped, tag = 'input window, operand 3, single buffered']
    #allocation6 [shape = 's32[1]{0}', space=sflag, size = 0x4, scoped, tag = 'scoped memory for _timestep_embedder_apply.1']
    #allocation7 [shape = 'u8[4096]{0}', space=vmem, size = 0x1000, scoped, tag = 'output window, operand 0, single buffered']
    %10 = vsyncpa [#allocation3], 0
    %11 = vsyncpa [#allocation6], 0
    %12 = vsyncpa [#allocation4], 0
    // Predicated region
    $region2: #{_timestep_embedder_apply.1} parent=1 // pred_check
      _
    $region3: #{_timestep_embedder_apply.1} parent=1 // pred_check_branch
      %14 = sbr.rel (0) target = $region5
    $region4: #{_timestep_embedder_apply.1} parent=1 // pred_region
      _
    $region5: #{_timestep_embedder_apply.1} parent=1 // pred_fallthru
      _
    // Predicated region
    $region6: #{_timestep_embedder_apply.1} parent=1 // pred_check
      _
    $region7: #{_timestep_embedder_apply.1} parent=1 // pred_check_branch
      %16 = sbr.rel (0) target = $region9
    $region8: #{_timestep_embedder_apply.1} parent=1 // pred_region
      %s18 = ssub.s32 4096, 4096
      %19 = vsyncadd [#allocation3], %s18
      %s20 = sshll.u32 [#allocation2], 4
      %s21 = int_to_ptr.vmem [resolvable:$true] %s20
      %26 = dma.hbm_to_vmem [thread:$0]  %s1, 4096, %s21, [#allocation3], 128, 128, 8
    $region9: #{_timestep_embedder_apply.1} parent=1 // pred_fallthru
      _
    // Predicated region
    $region10: #{_timestep_embedder_apply.1} parent=1 // pred_check
      _
    $region11: #{_timestep_embedder_apply.1} parent=1 // pred_check_branch
      %28 = sbr.rel (0) target = $region13
    $region12: #{_timestep_embedder_apply.1} parent=1 // pred_region
      _
    $region13: #{_timestep_embedder_apply.1} parent=1 // pred_fallthru
      _
    // Predicated region
    $region14: #{_timestep_embedder_apply.1} parent=1 // pred_check
      _
    $region15: #{_timestep_embedder_apply.1} parent=1 // pred_check_branch
      %30 = sbr.rel (0) target = $region17
    $region16: #{_timestep_embedder_apply.1} parent=1 // pred_region
      %s32 = ssub.s32 2048, 2048
      %33 = vsyncadd [#allocation6], %s32
      %s34 = sshll.u32 [#allocation5], 4
      %s35 = int_to_ptr.vmem [resolvable:$true] %s34
      %40 = dma.hbm_to_vmem [thread:$0]  %s3, 2048, %s35, [#allocation6], 128, 128, 8
    $region17: #{_timestep_embedder_apply.1} parent=1 // pred_fallthru
      _
    // Predicated region
    $region18: #{_timestep_embedder_apply.1} parent=1 // pred_check
      _
    $region19: #{_timestep_embedder_apply.1} parent=1 // pred_check_branch
      %42 = sbr.rel (0) target = $region21
    $region20: #{_timestep_embedder_apply.1} parent=1 // pred_region
      _
    $region21: #{_timestep_embedder_apply.1} parent=1 // pred_fallthru
      _
    // Predicated region
    $region22: #{_timestep_embedder_apply.1} parent=1 // pred_check
      _
    $region23: #{_timestep_embedder_apply.1} parent=1 // pred_check_branch
      %44 = sbr.rel (0) target = $region25
    $region24: #{_timestep_embedder_apply.1} parent=1 // pred_region
      %45 = dma.done [#allocation3], 4096
    $region25: #{_timestep_embedder_apply.1} parent=1 // pred_fallthru
      _
    // Predicated region
    $region26: #{_timestep_embedder_apply.1} parent=1 // pred_check
      _
    $region27: #{_timestep_embedder_apply.1} parent=1 // pred_check_branch
      %47 = sbr.rel (0) target = $region29
    $region28: #{_timestep_embedder_apply.1} parent=1 // pred_region
      %48 = dma.done [#allocation6], 2048
    $region29: #{_timestep_embedder_apply.1} parent=1 // pred_fallthru
      _
    %v49 = vld [vmem:[%s0] sm:$0xff]
    %v50 = vlaneseq
    %v51 = vand.u32 %v50, 127
    %v52 = vcvt.s32.f32 %v51
    %v53 = vmul.f32 %v52, -0.071955785
    %v54 = vmul.f32 %v53, 1.442695
    %v55 = vpow.pop %v54
    %57 = vset.pattern.permute.xlu0 0
    %58 = vperm.xlu0 %57, %v49
    %v59 = vpop.permute.xlu0 %58
    %v61 = vmul.f32 %v59, %v55
    %v62 = vand.u32 2147483647, %v61
    %vm63 = vcmp.le.f32.partialorder %v62, 0.7853982
    %vm64 = vcmp.lt.s32.totalorder %v61, 0
    %v65 = vand.u32 %v61, 2139095040
    %v66 = vshrl.u32 %v65, 23
    %v67 = vsub.s32 %v66, 127
    %v68 = vand.u32 2147483647, %v61
    %v69 = vand.u32 %v68, 8388607
    %v70 = vor.u32 %v69, 8388608
    %v71 = vsub.s32 0, %v70
    %v72 = vadd.s32 %v67, 1
    %vm73 = vcmp.gt.s32.totalorder %v72, 0
    %v74 = vsel %vm73, %v72, 0
    %v75 = vshrl.u32 %v74, 5
    %v76 = vand.u32 %v74, 31
    %v77 = vsub.s32 32, %v76
    %v78 = vshrl.u32 683565275, %v77
    %v79 = vshll.u32 683565275, %v76
    %v80 = vshrl.u32 2475754826, %v77
    %v81 = vor.u32 %v79, %v80
    %v82 = vshll.u32 2475754826, %v76
    %v83 = vshrl.u32 2131351028, %v77
    %v84 = vor.u32 %v82, %v83
    %v85 = vshll.u32 2131351028, %v76
    %v86 = vshrl.u32 2102212464, %v77
    %v87 = vor.u32 %v85, %v86
    %v88 = vshll.u32 2102212464, %v76
    %v89 = vshrl.u32 920167782, %v77
    %v90 = vor.u32 %v88, %v89
    %v91 = vshll.u32 920167782, %v76
    %v92 = vshrl.u32 1326507024, %v77
    %v93 = vor.u32 %v91, %v92
    %vm94 = vcmp.lt.s32.totalorder %v75, 1
    %vm95 = vcmp.lt.s32.totalorder %v75, 2
    %vm96 = vcmp.lt.s32.totalorder %v75, 3
    %vm97 = vcmp.lt.s32.totalorder %v75, 4
    %v98 = vsel %vm94, %v78, %v81
    %v99 = vsel %vm97, %v87, 2102212464
    %v100 = vsel %vm96, %v84, %v99
    %v101 = vsel %vm95, %v98, %v100
    %v102 = vsel %vm94, %v81, %v84
    %v103 = vsel %vm97, %v90, 920167782
    %v104 = vsel %vm96, %v87, %v103
    %v105 = vsel %vm95, %v102, %v104
    %v106 = vsel %vm94, %v84, %v87
    %v107 = vsel %vm97, %v93, 1326507024
    %v108 = vsel %vm96, %v90, %v107
    %v109 = vsel %vm95, %v106, %v108
    %v110 = vshll.u32 %v70, 8
    %v111 = vmul.u32.u64.compose %v110, %v109
    %v112 = vextract.low.u32 %v111
    %v113 = vextract.high.u32 %v111
    %v114 = vmul.u32.u64.compose %v110, %v105
    %v115 = vextract.low.u32 %v114
    %v116 = vextract.high.u32 %v114
    %v117 = vmul.u32 %v110, %v101
    %v118 = vadd.s32 %v113, %v115
    %vm119 = vc.u32 %v113, %v115
    %v120 = vadd.s32 %v116, 1
    %v121 = vsel %vm119, %v120, %v116
    %v122 = vadd.s32 %v117, %v121
    %v123 = vadd.s32 %v122, 536870912
    %v124 = vshrl.u32 %v123, 30
    %v125 = vshll.u32 %v124, 30
    %v126 = vsub.s32 %v122, %v125
    %vm127 = vcmp.lt.s32.totalorder %v126, 0
    %v128 = vsub.s32 0, %v126
    %v129 = vsel %vm127, %v128, %v126
    %v130 = vclz %v129
    %v131 = vsub.s32 %v130, 2
    %vm132 = vcmp.gt.s32.totalorder 0, %v131
    %v133 = vsel %vm132, 0, %v131
    %v134 = vsub.s32 32, %v133
    %v135 = vshll.u32 %v126, %v133
    %v136 = vshrl.u32 %v118, %v134
    %v137 = vor.u32 %v135, %v136
    %v138 = vsub.s32 4294967266, %v133
    %v139 = vadd.s32 %v138, 127
    %v140 = vshll.u32 %v139, 23
    %v141 = vor.u32 4788187, %v140
    %v142 = vand.u32 2147483647, %v141
    %v144 = vcvt.s32.f32 %v137
    %v145 = vmul.f32 %v144, %v142
    %v146 = vxor.u32 %v145, 2147483648
    %v147 = vsel %vm64, %v146, %v145
    %v148 = vsub.s32 4, %v124
    %v149 = vsel %vm64, %v148, %v124
    %v150 = vsel %vm63, %v61, %v147
    %v151 = vsel %vm63, 0, %v149
    %v152 = vcosq.f32.pop %v150
    %v153 = vsinq.f32.pop %v150
    %vm154 = vweird.f32 %v61
    %v155 = vand.u32 %v151, 3
    %vm156 = vcmp.lt.s32.totalorder %v155, 2
    %vm157 = vcmp.eq.s32.totalorder %v155, 0
    %v158 = vxor.u32 %v153, 2147483648
    %v159 = vsel %vm157, %v152, %v158
    %vm160 = vcmp.eq.s32.totalorder %v155, 2
    %v161 = vxor.u32 %v152, 2147483648
    %v162 = vsel %vm160, %v161, %v153
    %v163 = vsel %vm156, %v159, %v162
    %v164 = vsel %vm154, nan, %v163
    %v165 = vand.u32 2147483647, %v61
    %vm166 = vcmp.le.f32.partialorder %v165, 0.7853982
    %vm167 = vcmp.lt.s32.totalorder %v61, 0
    %v168 = vand.u32 %v61, 2139095040
    %v169 = vshrl.u32 %v168, 23
    %v170 = vsub.s32 %v169, 127
    %v171 = vand.u32 2147483647, %v61
    %v172 = vand.u32 %v171, 8388607
    %v173 = vor.u32 %v172, 8388608
    %v174 = vsub.s32 0, %v173
    %v175 = vadd.s32 %v170, 1
    %vm176 = vcmp.gt.s32.totalorder %v175, 0
    %v177 = vsel %vm176, %v175, 0
    %v178 = vshrl.u32 %v177, 5
    %v179 = vand.u32 %v177, 31
    %v180 = vsub.s32 32, %v179
    %v181 = vshrl.u32 683565275, %v180
    %v182 = vshll.u32 683565275, %v179
    %v183 = vshrl.u32 2475754826, %v180
    %v184 = vor.u32 %v182, %v183
    %v185 = vshll.u32 2475754826, %v179
    %v186 = vshrl.u32 2131351028, %v180
    %v187 = vor.u32 %v185, %v186
    %v188 = vshll.u32 2131351028, %v179
    %v189 = vshrl.u32 2102212464, %v180
    %v190 = vor.u32 %v188, %v189
    %v191 = vshll.u32 2102212464, %v179
    %v192 = vshrl.u32 920167782, %v180
    %v193 = vor.u32 %v191, %v192
    %v194 = vshll.u32 920167782, %v179
    %v195 = vshrl.u32 1326507024, %v180
    %v196 = vor.u32 %v194, %v195
    %vm197 = vcmp.lt.s32.totalorder %v178, 1
    %vm198 = vcmp.lt.s32.totalorder %v178, 2
    %vm199 = vcmp.lt.s32.totalorder %v178, 3
    %vm200 = vcmp.lt.s32.totalorder %v178, 4
    %v201 = vsel %vm197, %v181, %v184
    %v202 = vsel %vm200, %v190, 2102212464
    %v203 = vsel %vm199, %v187, %v202
    %v204 = vsel %vm198, %v201, %v203
    %v205 = vsel %vm197, %v184, %v187
    %v206 = vsel %vm200, %v193, 920167782
    %v207 = vsel %vm199, %v190, %v206
    %v208 = vsel %vm198, %v205, %v207
    %v209 = vsel %vm197, %v187, %v190
    %v210 = vsel %vm200, %v196, 1326507024
    %v211 = vsel %vm199, %v193, %v210
    %v212 = vsel %vm198, %v209, %v211
    %v213 = vshll.u32 %v173, 8
    %v214 = vmul.u32.u64.compose %v213, %v212
    %v215 = vextract.low.u32 %v214
    %v216 = vextract.high.u32 %v214
    %v217 = vmul.u32.u64.compose %v213, %v208
    %v218 = vextract.low.u32 %v217
    %v219 = vextract.high.u32 %v217
    %v220 = vmul.u32 %v213, %v204
    %v221 = vadd.s32 %v216, %v218
    %vm222 = vc.u32 %v216, %v218
    %v223 = vadd.s32 %v219, 1
    %v224 = vsel %vm222, %v223, %v219
    %v225 = vadd.s32 %v220, %v224
    %v226 = vadd.s32 %v225, 536870912
    %v227 = vshrl.u32 %v226, 30
    %v228 = vshll.u32 %v227, 30
    %v229 = vsub.s32 %v225, %v228
    %vm230 = vcmp.lt.s32.totalorder %v229, 0
    %v231 = vsub.s32 0, %v229
    %v232 = vsel %vm230, %v231, %v229
    %v233 = vclz %v232
    %v234 = vsub.s32 %v233, 2
    %vm235 = vcmp.gt.s32.totalorder 0, %v234
    %v236 = vsel %vm235, 0, %v234
    %v237 = vsub.s32 32, %v236
    %v238 = vshll.u32 %v229, %v236
    %v239 = vshrl.u32 %v221, %v237
    %v240 = vor.u32 %v238, %v239
    %v241 = vsub.s32 4294967266, %v236
    %v242 = vadd.s32 %v241, 127
    %v243 = vshll.u32 %v242, 23
    %v244 = vor.u32 4788187, %v243
    %v245 = vand.u32 2147483647, %v244
    %v247 = vcvt.s32.f32 %v240
    %v248 = vmul.f32 %v247, %v245
    %v249 = vxor.u32 %v248, 2147483648
    %v250 = vsel %vm167, %v249, %v248
    %v251 = vsub.s32 4, %v227
    %v252 = vsel %vm167, %v251, %v227
    %v253 = vsel %vm166, %v61, %v250
    %v254 = vsel %vm166, 0, %v252
    %v255 = vcosq.f32.pop %v253
    %v256 = vsinq.f32.pop %v253
    %vm257 = vweird.f32 %v61
    %v258 = vadd.s32 %v254, 3
    %v259 = vand.u32 %v258, 3
    %vm260 = vcmp.lt.s32.totalorder %v259, 2
    %vm261 = vcmp.eq.s32.totalorder %v259, 0
    %v262 = vxor.u32 %v256, 2147483648
    %v263 = vsel %vm261, %v255, %v262
    %vm264 = vcmp.eq.s32.totalorder %v259, 2
    %v265 = vxor.u32 %v255, 2147483648
    %v266 = vsel %vm264, %v265, %v256
    %v267 = vsel %vm260, %v263, %v266
    %v268 = vsel %vm257, nan, %v267
    %v269 = vld [vmem:[#allocation2] sm:$0xff]
    %v270 = vld [vmem:[#allocation2 + $0x8] sm:$0xff]
    %v271 = vld [vmem:[#allocation2 + $0x10] sm:$0xff]
    %v272 = vld [vmem:[#allocation2 + $0x18] sm:$0xff]
    %v273 = vld [vmem:[#allocation2 + $0x20] sm:$0xff]
    %v274 = vld [vmem:[#allocation2 + $0x28] sm:$0xff]
    %v275 = vld [vmem:[#allocation2 + $0x30] sm:$0xff]
    %v276 = vld [vmem:[#allocation2 + $0x38] sm:$0xff]
    %v277 = vld [vmem:[#allocation2 + $0x40] sm:$0xff]
    %v278 = vld [vmem:[#allocation2 + $0x48] sm:$0xff]
    %v279 = vld [vmem:[#allocation2 + $0x50] sm:$0xff]
    %v280 = vld [vmem:[#allocation2 + $0x58] sm:$0xff]
    %v281 = vld [vmem:[#allocation2 + $0x60] sm:$0xff]
    %v282 = vld [vmem:[#allocation2 + $0x68] sm:$0xff]
    %v283 = vld [vmem:[#allocation2 + $0x70] sm:$0xff]
    %v284 = vld [vmem:[#allocation2 + $0x78] sm:$0xff]
    %v285 = vld [vmem:[#allocation2 + $0x80] sm:$0xff]
    %v286 = vld [vmem:[#allocation2 + $0x88] sm:$0xff]
    %v287 = vld [vmem:[#allocation2 + $0x90] sm:$0xff]
    %v288 = vld [vmem:[#allocation2 + $0x98] sm:$0xff]
    %v289 = vld [vmem:[#allocation2 + $0xa0] sm:$0xff]
    %v290 = vld [vmem:[#allocation2 + $0xa8] sm:$0xff]
    %v291 = vld [vmem:[#allocation2 + $0xb0] sm:$0xff]
    %v292 = vld [vmem:[#allocation2 + $0xb8] sm:$0xff]
    %v293 = vld [vmem:[#allocation2 + $0xc0] sm:$0xff]
    %v294 = vld [vmem:[#allocation2 + $0xc8] sm:$0xff]
    %v295 = vld [vmem:[#allocation2 + $0xd0] sm:$0xff]
    %v296 = vld [vmem:[#allocation2 + $0xd8] sm:$0xff]
    %v297 = vld [vmem:[#allocation2 + $0xe0] sm:$0xff]
    %v298 = vld [vmem:[#allocation2 + $0xe8] sm:$0xff]
    %v299 = vld [vmem:[#allocation2 + $0xf0] sm:$0xff]
    %v300 = vld [vmem:[#allocation2 + $0xf8] sm:$0xff]
    %v301 = vld [vmem:[%s2] sm:$0x1]
    %v303 = vlaneseq
    %v304 = vshrl.u32 %v303, 7
    %v305 = vsub.s32 0, %v304
    %v306 = vrot.slane %v301, %v305
    %308 = vmatprep.subr.mxu0 0.0
    %309 = vmatpush1.msra.mxu0 %v269
    %310 = vmatprep.subr.mxu0 0.0
    %311 = vmatpush1.msra.mxu0 %v270
    %312 = vmatprep.subr.mxu0 0.0
    %313 = vmatpush1.msra.mxu0 %v271
    %314 = vmatprep.subr.mxu0 0.0
    %315 = vmatpush1.msra.mxu0 %v272
    %316 = vmatprep.subr.mxu0 0.0
    %317 = vmatpush1.msra.mxu0 %v273
    %318 = vmatprep.subr.mxu0 0.0
    %319 = vmatpush1.msra.mxu0 %v274
    %320 = vmatprep.subr.mxu0 0.0
    %321 = vmatpush1.msra.mxu0 %v275
    %322 = vmatprep.subr.mxu0 0.0
    %323 = vmatpush1.msra.mxu0 %v276
    %324 = vmatprep.subr.mxu0 0.0
    %325 = vmatpush1.msra.mxu0 %v277
    %326 = vmatprep.subr.mxu0 0.0
    %327 = vmatpush1.msra.mxu0 %v278
    %328 = vmatprep.subr.mxu0 0.0
    %329 = vmatpush1.msra.mxu0 %v279
    %330 = vmatprep.subr.mxu0 0.0
    %331 = vmatpush1.msra.mxu0 %v280
    %332 = vmatprep.subr.mxu0 0.0
    %333 = vmatpush1.msra.mxu0 %v281
    %334 = vmatprep.subr.mxu0 0.0
    %335 = vmatpush1.msra.mxu0 %v282
    %336 = vmatprep.subr.mxu0 0.0
    %337 = vmatpush1.msra.mxu0 %v283
    %338 = vmatprep.subr.mxu0 0.0
    %339 = vmatpush1.msra.mxu0 %v284
    %340 = vmatprep.subr.mxu0 0.0
    %341 = vmatpush1.msra.mxu0 %v285
    %342 = vmatprep.subr.mxu0 0.0
    %343 = vmatpush1.msra.mxu0 %v286
    %344 = vmatprep.subr.mxu0 0.0
    %345 = vmatpush1.msra.mxu0 %v287
    %346 = vmatprep.subr.mxu0 0.0
    %347 = vmatpush1.msra.mxu0 %v288
    %348 = vmatprep.subr.mxu0 0.0
    %349 = vmatpush1.msra.mxu0 %v289
    %350 = vmatprep.subr.mxu0 0.0
    %351 = vmatpush1.msra.mxu0 %v290
    %352 = vmatprep.subr.mxu0 0.0
    %353 = vmatpush1.msra.mxu0 %v291
    %354 = vmatprep.subr.mxu0 0.0
    %355 = vmatpush1.msra.mxu0 %v292
    %356 = vmatprep.subr.mxu0 0.0
    %357 = vmatpush1.msra.mxu0 %v293
    %358 = vmatprep.subr.mxu0 0.0
    %359 = vmatpush1.msra.mxu0 %v294
    %360 = vmatprep.subr.mxu0 0.0
    %361 = vmatpush1.msra.mxu0 %v295
    %362 = vmatprep.subr.mxu0 0.0
    %363 = vmatpush1.msra.mxu0 %v296
    %364 = vmatprep.subr.mxu0 0.0
    %365 = vmatpush1.msra.mxu0 %v297
    %366 = vmatprep.subr.mxu0 0.0
    %367 = vmatpush1.msra.mxu0 %v298
    %368 = vmatprep.subr.mxu0 0.0
    %369 = vmatpush1.msra.mxu0 %v299
    %370 = vmatprep.subr.mxu0 0.0
    %371 = vmatpush1.msra.mxu0 %v300
    %372 = vmatprep.mubr.f32.mxu0 %v268
    %373 = vmatmul.mubr.f32.gmra.mrb[0].mxu0 %v164
    %v374 = vpop.f32.mrb[0].mxu0
    %v375 = vadd.f32 %v306, %v374
    %v376 = vpop.f32.mrb[0].mxu0
    %377 = vdwg.mxu0
    %v378 = vxor.u32 %v375, 2147483648
    %v379 = vmul.f32 %v378, 1.442695
    %v380 = vpow.pop %v379
    %v381 = vadd.f32 %v380, 1.0
    %v382 = vrcp.pop %v381
    %v383 = vmul.f32 1.0, %v382
    %v384 = vmul.f32 %v375, %v383
    %v385 = vld [vmem:[#allocation5] sm:$0xff]
    %v386 = vld [vmem:[#allocation5 + $0x8] sm:$0xff]
    %v387 = vld [vmem:[#allocation5 + $0x10] sm:$0xff]
    %v388 = vld [vmem:[#allocation5 + $0x18] sm:$0xff]
    %v389 = vld [vmem:[#allocation5 + $0x20] sm:$0xff]
    %v390 = vld [vmem:[#allocation5 + $0x28] sm:$0xff]
    %v391 = vld [vmem:[#allocation5 + $0x30] sm:$0xff]
    %v392 = vld [vmem:[#allocation5 + $0x38] sm:$0xff]
    %v393 = vld [vmem:[#allocation5 + $0x40] sm:$0xff]
    %v394 = vld [vmem:[#allocation5 + $0x48] sm:$0xff]
    %v395 = vld [vmem:[#allocation5 + $0x50] sm:$0xff]
    %v396 = vld [vmem:[#allocation5 + $0x58] sm:$0xff]
    %v397 = vld [vmem:[#allocation5 + $0x60] sm:$0xff]
    %v398 = vld [vmem:[#allocation5 + $0x68] sm:$0xff]
    %v399 = vld [vmem:[#allocation5 + $0x70] sm:$0xff]
    %v400 = vld [vmem:[#allocation5 + $0x78] sm:$0xff]
    %v401 = vld [vmem:[%s4] sm:$0x1]
    %v403 = vlaneseq
    %v404 = vshrl.u32 %v403, 7
    %v405 = vsub.s32 0, %v404
    %v406 = vrot.slane %v401, %v405
    %408 = vmatprep.subr.mxu0 0.0
    %409 = vmatpush1.msra.mxu0 %v385
    %410 = vmatprep.subr.mxu0 0.0
    %411 = vmatpush1.msra.mxu0 %v386
    %412 = vmatprep.subr.mxu0 0.0
    %413 = vmatpush1.msra.mxu0 %v387
    %414 = vmatprep.subr.mxu0 0.0
    %415 = vmatpush1.msra.mxu0 %v388
    %416 = vmatprep.subr.mxu0 0.0
    %417 = vmatpush1.msra.mxu0 %v389
    %418 = vmatprep.subr.mxu0 0.0
    %419 = vmatpush1.msra.mxu0 %v390
    %420 = vmatprep.subr.mxu0 0.0
    %421 = vmatpush1.msra.mxu0 %v391
    %422 = vmatprep.subr.mxu0 0.0
    %423 = vmatpush1.msra.mxu0 %v392
    %424 = vmatprep.subr.mxu0 0.0
    %425 = vmatpush1.msra.mxu0 %v393
    %426 = vmatprep.subr.mxu0 0.0
    %427 = vmatpush1.msra.mxu0 %v394
    %428 = vmatprep.subr.mxu0 0.0
    %429 = vmatpush1.msra.mxu0 %v395
    %430 = vmatprep.subr.mxu0 0.0
    %431 = vmatpush1.msra.mxu0 %v396
    %432 = vmatprep.subr.mxu0 0.0
    %433 = vmatpush1.msra.mxu0 %v397
    %434 = vmatprep.subr.mxu0 0.0
    %435 = vmatpush1.msra.mxu0 %v398
    %436 = vmatprep.subr.mxu0 0.0
    %437 = vmatpush1.msra.mxu0 %v399
    %438 = vmatprep.subr.mxu0 0.0
    %439 = vmatpush1.msra.mxu0 %v400
    %440 = vmatprep.subr.mxu0 0.0
    %441 = vmatpush1.msra.mxu0 0.0
    %442 = vmatprep.subr.mxu0 0.0
    %443 = vmatpush1.msra.mxu0 0.0
    %444 = vmatprep.subr.mxu0 0.0
    %445 = vmatpush1.msra.mxu0 0.0
    %446 = vmatprep.subr.mxu0 0.0
    %447 = vmatpush1.msra.mxu0 0.0
    %448 = vmatprep.subr.mxu0 0.0
    %449 = vmatpush1.msra.mxu0 0.0
    %450 = vmatprep.subr.mxu0 0.0
    %451 = vmatpush1.msra.mxu0 0.0
    %452 = vmatprep.subr.mxu0 0.0
    %453 = vmatpush1.msra.mxu0 0.0
    %454 = vmatprep.subr.mxu0 0.0
    %455 = vmatpush1.msra.mxu0 0.0
    %456 = vmatprep.subr.mxu0 0.0
    %457 = vmatpush1.msra.mxu0 0.0
    %458 = vmatprep.subr.mxu0 0.0
    %459 = vmatpush1.msra.mxu0 0.0
    %460 = vmatprep.subr.mxu0 0.0
    %461 = vmatpush1.msra.mxu0 0.0
    %462 = vmatprep.subr.mxu0 0.0
    %463 = vmatpush1.msra.mxu0 0.0
    %464 = vmatprep.subr.mxu0 0.0
    %465 = vmatpush1.msra.mxu0 0.0
    %466 = vmatprep.subr.mxu0 0.0
    %467 = vmatpush1.msra.mxu0 0.0
    %468 = vmatprep.subr.mxu0 0.0
    %469 = vmatpush1.msra.mxu0 0.0
    %470 = vmatprep.subr.mxu0 0.0
    %471 = vmatpush1.msra.mxu0 0.0
    %472 = vmatprep.mubr.f32.mxu0 0.0
    %473 = vmatmul.mubr.f32.gmra.mrb[0].mxu0 %v384
    %v474 = vpop.f32.mrb[0].mxu0
    %v475 = vadd.f32 %v406, %v474
    %v476 = vpop.f32.mrb[0].mxu0
    %477 = vdwg.mxu0
    %478 = vst [vmem:[#allocation7] sm:$0xff] %v475
    // Predicated region
    $region30: #{_timestep_embedder_apply.1} parent=1 // pred_check
      _
    $region31: #{_timestep_embedder_apply.1} parent=1 // pred_check_branch
      %480 = sbr.rel (0) target = $region33
    $region32: #{_timestep_embedder_apply.1} parent=1 // pred_region
      %s482 = ssub.s32 128, 128
      %483 = vsyncadd [#allocation4], %s482
      %s485 = sshll.u32 [#allocation7], 4
      %s486 = int_to_ptr.vmem [resolvable:$true] %s485
      %488 = dma.vmem_to_hbm [thread:$0]  %s486, 128, %s5, [#allocation4]
    $region33: #{_timestep_embedder_apply.1} parent=1 // pred_fallthru
      _
    // Predicated region
    $region34: #{_timestep_embedder_apply.1} parent=1 // pred_check
      _
    $region35: #{_timestep_embedder_apply.1} parent=1 // pred_check_branch
      %490 = sbr.rel (0) target = $region37
    $region36: #{_timestep_embedder_apply.1} parent=1 // pred_region
      %491 = dma.done [#allocation4], 128
    $region37: #{_timestep_embedder_apply.1} parent=1 // pred_fallthru
      _
    %492 = vsyncpa [#allocation3], 1
    %493 = vsyncpa [#allocation6], 1
    %494 = vsyncpa [#allocation4], 1

</llo_original>
